<compile_context>
chip_gen: v7x
topology: tpu7x:2x2x1
jax: 0.10.0
libtpu: 0.0.40
codegen_flags: <defaults>
</compile_context>

<pallas_src>
import math

import jax
import jax.numpy as jnp
from jax.experimental import pallas as pl
from jax.experimental.pallas import tpu as pltpu


def _pw_conv_kernel(x_ref, w_ref, b_ref, o_ref):
    # x_ref: (1, C_in, tile_T)   w_ref: (C_out, C_in)   b_ref: (C_out, 1) f32
    # o_ref: (1, C_out, tile_T)
    acc = jnp.dot(w_ref[...], x_ref[0], preferred_element_type=jnp.float32)
    o_ref[0] = (acc + b_ref[...]).astype(o_ref.dtype)


def pointwise_conv1d(x, weight, bias=None, *, stride=1, padding=0,
                     tile_time=1024):
    """1x1 Conv1d.  x: (B, C_in, T), weight: (C_out, C_in[, 1]), bias: (C_out,)."""
    B, C_in, T = x.shape
    if weight.ndim == 3:               # PyTorch Conv1d weight layout (C_out, C_in, 1)
        weight = weight[:, :, 0]
    C_out = weight.shape[0]

    # kernel_size == 1 => padding / stride are pure time-axis index plumbing.
    # TODO(synk): fold padding/stride into the time index_map (strided pl.ds /
    # pl.Element offsets) to avoid this extra HBM pass when they are nonzero.
    if padding:
        x = jnp.pad(x, ((0, 0), (0, 0), (padding, padding)))
    if stride != 1:
        x = x[:, :, ::stride]
    T_out = x.shape[2]

    # Time tile = lane dim of both the x and y blocks: multiple of 128 for
    # lane-dense (unmasked) stores, or the full time extent when T_out < 128.
    tile_time = max(128, (tile_time // 128) * 128)
    if T_out >= 128:
        tile_t = min(tile_time, (T_out // 128) * 128)
    else:
        tile_t = T_out                 # block == full array dim (allowed)
    num_t = pl.cdiv(T_out, tile_t)     # ragged last block handled by Pallas

    # Weight follows the activation dtype (note: bf16 x => weight demoted to bf16).
    w2 = weight.astype(x.dtype)                          # (C_out, C_in)
    if bias is None:
        b2 = jnp.zeros((C_out, 1), jnp.float32)
    else:
        b2 = bias.reshape(C_out, 1).astype(jnp.float32)

    itemsize = jnp.dtype(x.dtype).itemsize
    cost = pl.CostEstimate(
        flops=2 * B * T_out * C_in * C_out,
        bytes_accessed=itemsize * (B * T_out * (C_in + C_out) + C_in * C_out)
        + 4 * C_out,
        transcendentals=0,
    )

    return pl.pallas_call(
        _pw_conv_kernel,
        out_shape=jax.ShapeDtypeStruct((B, C_out, T_out), x.dtype),
        grid_spec=pltpu.PrefetchScalarGridSpec(
            num_scalar_prefetch=0,
            grid=(B, num_t),
            in_specs=[
                pl.BlockSpec((1, C_in, tile_t), lambda b, t: (b, 0, t)),
                pl.BlockSpec((C_out, C_in), lambda b, t: (0, 0)),   # resident
                pl.BlockSpec((C_out, 1), lambda b, t: (0, 0)),      # resident
            ],
            out_specs=pl.BlockSpec((1, C_out, tile_t), lambda b, t: (b, 0, t)),
        ),
        compiler_params=pltpu.CompilerParams(
            dimension_semantics=("parallel", "parallel")),
        cost_estimate=cost,
    )(x, w2, b2)


if __name__ == "__main__":
    # Small config consistent with the module: 1x1 conv mixing 64 -> 128
    # channels over a short sequence.
    B, C_in, C_out, T = 2, 64, 128, 16
    key = jax.random.PRNGKey(0)
    kx, kw, kb = jax.random.split(key, 3)

    x = jax.random.normal(kx, (B, C_in, T), dtype=jnp.float32)

    # nn.Conv1d default init: U(-1/sqrt(C_in * k), 1/sqrt(C_in * k)), k = 1.
    bound = 1.0 / math.sqrt(C_in)
    weight = jax.random.uniform(kw, (C_out, C_in, 1), jnp.float32,
                                minval=-bound, maxval=bound)
    bias = jax.random.uniform(kb, (C_out,), jnp.float32,
                              minval=-bound, maxval=bound)

    y = pointwise_conv1d(x, weight, bias)
    jax.block_until_ready(y)

    # Reference: 1x1 conv == dense matmul over the channel axis + bias.
    # The kernel matmul runs at default (single-pass bf16) MXU precision, so
    # compare against the HIGHEST-precision reference with a loosened tolerance.
    y_ref = jnp.einsum(
        "bct,oc->bot", x, weight[:, :, 0],
        precision=jax.lax.Precision.HIGHEST) + bias[None, :, None]

    assert y.shape == (B, C_out, T) and y.dtype == x.dtype
    assert jnp.allclose(y, y_ref, atol=1e-2, rtol=1e-2), float(
        jnp.max(jnp.abs(y - y_ref)))

    print("KERNEL_OK")
</pallas_src>

<mosaic_0001>
module attributes {stable_mosaic.version = 11 : i64} {
  func.func @_pw_conv_kernel(%arg0: i32, %arg1: i32, %arg2: memref<1x64x16xf32, #tpu.memory_space<vmem>>, %arg3: memref<128x64xf32, #tpu.memory_space<vmem>>, %arg4: memref<128x1xf32, #tpu.memory_space<vmem>>, %arg5: memref<1x128x16xf32, #tpu.memory_space<vmem>>) attributes {dimension_semantics = [#tpu.dimension_semantics<parallel>, #tpu.dimension_semantics<parallel>], iteration_bounds = array<i64: 2, 1>, scalar_prefetch = 0 : i64, scratch_operands = 0 : i64, tpu.core_type = #tpu.core_type<tc>, window_params = [{transform_indices = @transform_0, window_bounds = array<i64: 1, 64, 16>}, {pipeline_mode = #tpu.pipeline_mode<synchronous>, transform_indices = @transform_1, window_bounds = array<i64: 128, 64>}, {pipeline_mode = #tpu.pipeline_mode<synchronous>, transform_indices = @transform_2, window_bounds = array<i64: 128, 1>}, {transform_indices = @transform_3, window_bounds = array<i64: 1, 128, 16>}]} {
    %c0 = arith.constant 0 : index
    %c0_0 = arith.constant 0 : index
    %0 = vector.load %arg3[%c0, %c0_0] : memref<128x64xf32, #tpu.memory_space<vmem>>, vector<128x64xf32>
    %c0_1 = arith.constant 0 : index
    %c0_2 = arith.constant 0 : index
    %c0_3 = arith.constant 0 : index
    %1 = vector.load %arg2[%c0_1, %c0_2, %c0_3] : memref<1x64x16xf32, #tpu.memory_space<vmem>>, vector<1x64x16xf32>
    %2 = vector.shape_cast %1 : vector<1x64x16xf32> to vector<64x16xf32>
    %cst = arith.constant dense<0.000000e+00> : vector<128x16xf32>
    %3 = tpu.matmul %0, %2, %cst {dimension_numbers = #tpu.dot_dimension_numbers<[1], [0], [0], [1], [0, 0, 1, 1], [], []>} : vector<128x64xf32>, vector<64x16xf32>, vector<128x16xf32> -> vector<128x16xf32>
    %c0_4 = arith.constant 0 : index
    %c0_5 = arith.constant 0 : index
    %4 = vector.load %arg4[%c0_4, %c0_5] : memref<128x1xf32, #tpu.memory_space<vmem>>, vector<128x1xf32>
    %5 = vector.broadcast %4 : vector<128x1xf32> to vector<128x16xf32>
    %6 = arith.addf %3, %5 : vector<128x16xf32>
    %c0_6 = arith.constant 0 : index
    %c0_7 = arith.constant 0 : index
    %c0_8 = arith.constant 0 : index
    %7 = vector.load %arg5[%c0_6, %c0_7, %c0_8] : memref<1x128x16xf32, #tpu.memory_space<vmem>>, vector<1x128x16xf32>
    %8 = vector.shape_cast %7 : vector<1x128x16xf32> to vector<128x16xf32>
    %9 = vector.shape_cast %6 : vector<128x16xf32> to vector<1x128x16xf32>
    tpu.vector_store %arg5[%c0_6, %c0_7, %c0_8], %9 {strides = array<i32>} : memref<1x128x16xf32, #tpu.memory_space<vmem>>, vector<1x128x16xf32>,
    return
  }
  func.func @transform_0(%arg0: i32, %arg1: i32) -> (i32, i32, i32) {
    %c0_i32 = arith.constant 0 : i32
    %c0_i32_0 = arith.constant 0 : i32
    return %arg0, %c0_i32, %arg1 : i32, i32, i32
  }
  func.func @transform_1(%arg0: i32, %arg1: i32) -> (i32, i32) {
    %c0_i32 = arith.constant 0 : i32
    %c0_i32_0 = arith.constant 0 : i32
    %c0_i32_1 = arith.constant 0 : i32
    return %c0_i32, %c0_i32_0 : i32, i32
  }
  func.func @transform_2(%arg0: i32, %arg1: i32) -> (i32, i32) {
    %c0_i32 = arith.constant 0 : i32
    %c0_i32_0 = arith.constant 0 : i32
    %c0_i32_1 = arith.constant 0 : i32
    return %c0_i32, %c0_i32_0 : i32, i32
  }
  func.func @transform_3(%arg0: i32, %arg1: i32) -> (i32, i32, i32) {
    %c0_i32 = arith.constant 0 : i32
    %c0_i32_0 = arith.constant 0 : i32
    return %arg0, %c0_i32, %arg1 : i32, i32, i32
  }
}

</mosaic_0001>

<llo_original>
// kernel: tpu_custom_call.1
$region0: #{tpu_custom_call.1}
  #allocation0 [shape = 'u32[]', space=smem, size = 0x4, offset = 0x4, fixed_abs, tag = 'smem constant byte address 0x4 - core index']
  #allocation1 [shape = 'u32[144,128]{1,0:T(1,128)}', space=vmem, size = 0x12000, scoped, tag = 'internal scratch']
  %s0 = inlined_call_operand.vmem [shape: f32[2,64,16], index: 0, kind: input, shape index: {}]
  %s1 = inlined_call_operand.vmem [shape: f32[128,64], index: 1, kind: input, shape index: {}]
  %s2 = inlined_call_operand.vmem [shape: f32[128,1], index: 2, kind: input, shape index: {}]
  %s3 = inlined_call_operand.vmem [shape: f32[2,128,16], index: 3, kind: output, shape index: {}]
  %s4 = sld [smem:[#allocation0]]
  $region45: #{tpu_custom_call.1} parent=0
    _
  %s6 = ssub.s32 1, %s4
  %s7 = scalar_select 0, %s6, %s4
  loop: start=0, step=1, limit=4
  $region2: #{tpu_custom_call.1} parent=0 // loop_pre_header
    _
  $region3: #{tpu_custom_call.1} parent=0 // loop_header
    %s9 = sphi 0, %s13
    %p10 = scmp.ge.s32.totalorder %s9, 4
    %s16 = sphi 0, %s28
    %s17 = sphi 0, %s24
    %s18 = sphi 0, %s16
    %s19 = sphi 0, %s17
    %s20 = sphi 0, %s18
    %s21 = sphi 0, %s19
    %s33 = sphi 0, %s35
    %s36 = sphi 0, %s33
    %s37 = sphi 0, %s36
    %s53 = sphi 0, %s37
    %s57 = sphi 0, %s57
    %s59 = sphi 0, %s57
    %s60 = sphi 0, %s59
    %s74 = sphi 0, %s60
    %s78 = sphi 0, %s78
    %s80 = sphi 0, %s78
    %s81 = sphi 0, %s80
    %s95 = sphi 0, %s81
    %s103 = sphi 0, %s105
    %s106 = sphi 0, %s103
    %s107 = sphi 0, %s106
    %s123 = sphi 0, %s107
  $region4: #{tpu_custom_call.1} parent=0 // loop_header_branch
    %12 = sbr.rel (%p10) target = $region8
  $region5: #{tpu_custom_call.1} parent=0 // loop_body
    %s14 = ssub.s32 %s9, 1
    %s15 = ssub.s32 %s9, 2
    %s22 = sadd.s32 1, %s17
    %p23 = scmp.ge.s32.totalorder %s22, 1
    %s24 = scalar_select %p23, 0, %s22
    %s25 = sadd.s32 1, %s16
    %s26 = scalar_select %p23, %s25, %s16
    %p27 = scmp.ge.s32.totalorder %s26, 2
    %s28 = scalar_select %p27, 0, %s26
    %s29 = ssub.s32 %s16, %s28
    %s30 = ssub.s32 %s17, %s24
    %s31 = sor.u32 %s29, %s30
    %p32 = scmp.eq.s32.totalorder %s31, 0
    %s34 = sadd.s32 %s33, 1
    %s35 = scalar_select %p32, %s33, %s34
    %p38 = pneg %p32
    %p39 = scmp.eq.s32.totalorder %s9, 1
    %p40 = por %p38, %p39
    %p41 = scmp.ne.s32.totalorder %s33, %s36
    %p42 = scmp.eq.s32.totalorder %s9, 0
    %p43 = por %p41, %p42
    %p44 = scmp.ne.s32.totalorder %s33, %s36
    %p45 = scmp.eq.s32.totalorder %s14, 1
    %p46 = por %p44, %p45
    %p47 = scmp.ne.s32.totalorder %s36, %s37
    %p48 = scmp.eq.s32.totalorder %s14, 0
    %p49 = por %p47, %p48
    %p50 = scmp.ne.s32.totalorder %s36, %s37
    %p51 = scmp.eq.s32.totalorder %s15, 1
    %p52 = por %p50, %p51
    %p54 = scmp.ne.s32.totalorder %s37, %s53
    %p55 = scmp.eq.s32.totalorder %s15, 0
    %p56 = por %p54, %p55
    %s58 = sadd.s32 %s57, 1
    %p61 = scmp.eq.s32.totalorder %s9, 1
    %p62 = scmp.ne.s32.totalorder %s57, %s59
    %p63 = scmp.eq.s32.totalorder %s9, 0
    %p64 = por %p62, %p63
    %p65 = scmp.ne.s32.totalorder %s57, %s59
    %p66 = scmp.eq.s32.totalorder %s14, 1
    %p67 = por %p65, %p66
    %p68 = scmp.ne.s32.totalorder %s59, %s60
    %p69 = scmp.eq.s32.totalorder %s14, 0
    %p70 = por %p68, %p69
    %p71 = scmp.ne.s32.totalorder %s59, %s60
    %p72 = scmp.eq.s32.totalorder %s15, 1
    %p73 = por %p71, %p72
    %p75 = scmp.ne.s32.totalorder %s60, %s74
    %p76 = scmp.eq.s32.totalorder %s15, 0
    %p77 = por %p75, %p76
    %s79 = sadd.s32 %s78, 1
    %p82 = scmp.eq.s32.totalorder %s9, 1
    %p83 = scmp.ne.s32.totalorder %s78, %s80
    %p84 = scmp.eq.s32.totalorder %s9, 0
    %p85 = por %p83, %p84
    %p86 = scmp.ne.s32.totalorder %s78, %s80
    %p87 = scmp.eq.s32.totalorder %s14, 1
    %p88 = por %p86, %p87
    %p89 = scmp.ne.s32.totalorder %s80, %s81
    %p90 = scmp.eq.s32.totalorder %s14, 0
    %p91 = por %p89, %p90
    %p92 = scmp.ne.s32.totalorder %s80, %s81
    %p93 = scmp.eq.s32.totalorder %s15, 1
    %p94 = por %p92, %p93
    %p96 = scmp.ne.s32.totalorder %s81, %s95
    %p97 = scmp.eq.s32.totalorder %s15, 0
    %p98 = por %p96, %p97
    %s99 = ssub.s32 %s16, %s28
    %s100 = ssub.s32 %s17, %s24
    %s101 = sor.u32 %s99, %s100
    %p102 = scmp.eq.s32.totalorder %s101, 0
    %s104 = sadd.s32 %s103, 1
    %s105 = scalar_select %p102, %s103, %s104
    %p108 = pneg %p102
    %p109 = scmp.eq.s32.totalorder %s9, 1
    %p110 = por %p108, %p109
    %p111 = scmp.ne.s32.totalorder %s103, %s106
    %p112 = scmp.eq.s32.totalorder %s9, 0
    %p113 = por %p111, %p112
    %p114 = scmp.ne.s32.totalorder %s103, %s106
    %p115 = scmp.eq.s32.totalorder %s14, 1
    %p116 = por %p114, %p115
    %p117 = scmp.ne.s32.totalorder %s106, %s107
    %p118 = scmp.eq.s32.totalorder %s14, 0
    %p119 = por %p117, %p118
    %p120 = scmp.ne.s32.totalorder %s106, %s107
    %p121 = scmp.eq.s32.totalorder %s15, 1
    %p122 = por %p120, %p121
    %p124 = scmp.ne.s32.totalorder %s107, %s123
    %p125 = scmp.eq.s32.totalorder %s15, 0
    %p126 = por %p124, %p125
    %p127 = scmp.le.s32.totalorder 1, %s9
    %p128 = scmp.lt.s32.totalorder %s9, 3
    %p129 = pnand %p127, %p128
    %p130 = pneg %p129
    // Predicated region
    $region9: #{tpu_custom_call.1} parent=5 // pred_check
      _
    $region10: #{tpu_custom_call.1} parent=5 // pred_check_branch
      %132 = sbr.rel (%p129) target = $region12
    $region11: #{tpu_custom_call.1} parent=5 // pred_region
      %s133 = ssub.s32 %s9, 1
      // Predicated region
      $region13: #{tpu_custom_call.1} parent=11 // pred_check
        %p134 = pneg %p70
      $region14: #{tpu_custom_call.1} parent=11 // pred_check_branch
        %136 = sbr.rel (%p134) target = $region16
      $region15: #{tpu_custom_call.1} parent=11 // pred_region
        _
      $region16: #{tpu_custom_call.1} parent=11 // pred_fallthru
        _
      // Predicated region
      $region17: #{tpu_custom_call.1} parent=11 // pred_check
        %p137 = pneg %p91
      $region18: #{tpu_custom_call.1} parent=11 // pred_check_branch
        %139 = sbr.rel (%p137) target = $region20
      $region19: #{tpu_custom_call.1} parent=11 // pred_region
        _
      $region20: #{tpu_custom_call.1} parent=11 // pred_fallthru
        _
    $region12: #{tpu_custom_call.1} parent=5 // pred_fallthru
      _
    %p140 = scmp.lt.s32.totalorder %s9, 2
    // Predicated region
    $region21: #{tpu_custom_call.1} parent=5 // pred_check
      %p141 = pneg %p140
    $region22: #{tpu_custom_call.1} parent=5 // pred_check_branch
      %143 = sbr.rel (%p141) target = $region24
    $region23: #{tpu_custom_call.1} parent=5 // pred_region
      // Predicated region
      $region25: #{tpu_custom_call.1} parent=23 // pred_check
        %p144 = pneg %p43
      $region26: #{tpu_custom_call.1} parent=23 // pred_check_branch
        %146 = sbr.rel (%p144) target = $region28
      $region27: #{tpu_custom_call.1} parent=23 // pred_region
        %p147 = scmp.lt.s32.totalorder %s16, 1
        %s148 = scalar_select %p147, %s16, 1
        %p149 = scmp.lt.s32.totalorder %s17, 0
        %s150 = scalar_select %p149, %s17, 0
        %s151 = smul.addr %s148, 8
        %s152 = sadd.s32 %s150, %s151
        %s153 = smul.addr %s152, 8
        %s154 = scalar_lea.vmem %s0, %s153
      $region28: #{tpu_custom_call.1} parent=23 // pred_fallthru
        _
    $region24: #{tpu_custom_call.1} parent=5 // pred_fallthru
      _
    %p155 = scmp.le.s32.totalorder 1, %s9
    %p156 = scmp.lt.s32.totalorder %s9, 3
    %p157 = pnand %p155, %p156
    %p158 = pneg %p157
    // Predicated region
    $region29: #{tpu_custom_call.1} parent=5 // pred_check
      _
    $region30: #{tpu_custom_call.1} parent=5 // pred_check_branch
      %160 = sbr.rel (%p157) target = $region32
    $region31: #{tpu_custom_call.1} parent=5 // pred_region
      %s161 = ssub.s32 %s9, 1
      %p162 = scmp.lt.s32.totalorder %s18, 1
      %s163 = scalar_select %p162, %s18, 1
      %p164 = scmp.lt.s32.totalorder %s19, 0
      %s165 = scalar_select %p164, %s19, 0
      %s166 = smul.addr %s163, 8
      %s167 = sadd.s32 %s165, %s166
      %s168 = smul.addr %s167, 8
      %s169 = scalar_lea.vmem %s0, %s168
      %p170 = pneg %p49
      %p171 = pneg %p46
      %p172 = pneg %p70
      %p173 = pneg %p67
      %p174 = pneg %p91
      %p175 = pneg %p88
      %p176 = pneg %p119
      %p177 = pneg %p116
      %p178 = scmp.lt.s32.totalorder %s18, 1
      %s179 = scalar_select %p178, %s18, 1
      %p180 = scmp.lt.s32.totalorder %s19, 0
      %s181 = scalar_select %p180, %s19, 0
      %s182 = smul.addr %s179, 16
      %s183 = sadd.s32 %s181, %s182
      %s184 = smul.addr %s183, 8
      %s185 = scalar_lea.vmem %s3, %s184
      %p186 = scmp.lt.s32.totalorder %s18, 1
      %s187 = scalar_select %p186, %s18, 1
      %p188 = scmp.lt.s32.totalorder %s19, 0
      %s189 = scalar_select %p188, %s19, 0
      %s190 = smul.addr %s187, 8
      %s191 = sadd.s32 %s189, %s190
      %s192 = smul.addr %s191, 8
      %s193 = scalar_lea.vmem %s0, %s192
      %p194 = scmp.lt.s32.totalorder %s18, 1
      %s195 = scalar_select %p194, %s18, 1
      %p196 = scmp.lt.s32.totalorder %s19, 0
      %s197 = scalar_select %p196, %s19, 0
      %s198 = smul.addr %s195, 16
      %s199 = sadd.s32 %s197, %s198
      %s200 = smul.addr %s199, 8
      %s201 = scalar_lea.vmem %s3, %s200
      %v202 = vld [vmem:[%s1] sm:$0xff]
      %v203 = vld [vmem:[%s1 + $0x8] sm:$0xff]
      %v204 = vld [vmem:[%s1 + $0x10] sm:$0xff]
      %v205 = vld [vmem:[%s1 + $0x18] sm:$0xff]
      %v206 = vld [vmem:[%s1 + $0x20] sm:$0xff]
      %v207 = vld [vmem:[%s1 + $0x28] sm:$0xff]
      %v208 = vld [vmem:[%s1 + $0x30] sm:$0xff]
      %v209 = vld [vmem:[%s1 + $0x38] sm:$0xff]
      %v210 = vld [vmem:[%s1 + $0x40] sm:$0xff]
      %v211 = vld [vmem:[%s1 + $0x48] sm:$0xff]
      %v212 = vld [vmem:[%s1 + $0x50] sm:$0xff]
      %v213 = vld [vmem:[%s1 + $0x58] sm:$0xff]
      %v214 = vld [vmem:[%s1 + $0x60] sm:$0xff]
      %v215 = vld [vmem:[%s1 + $0x68] sm:$0xff]
      %v216 = vld [vmem:[%s1 + $0x70] sm:$0xff]
      %v217 = vld [vmem:[%s1 + $0x78] sm:$0xff]
      %v218 = vld [vmem:[%s193] sm:$0xff]
      %v219 = vld [vmem:[%s193 + $0x8] sm:$0xff]
      %v220 = vld [vmem:[%s193 + $0x10] sm:$0xff]
      %v221 = vld [vmem:[%s193 + $0x18] sm:$0xff]
      %v222 = vld [vmem:[%s193 + $0x20] sm:$0xff]
      %v223 = vld [vmem:[%s193 + $0x28] sm:$0xff]
      %v224 = vld [vmem:[%s193 + $0x30] sm:$0xff]
      %v225 = vld [vmem:[%s193 + $0x38] sm:$0xff]
      %v226 = vld [vmem:[%s2] sm:$0xff]
      %v227 = vld [vmem:[%s2 + $0x8] sm:$0xff]
      %v228 = vld [vmem:[%s2 + $0x10] sm:$0xff]
      %v229 = vld [vmem:[%s2 + $0x18] sm:$0xff]
      %v230 = vld [vmem:[%s2 + $0x20] sm:$0xff]
      %v231 = vld [vmem:[%s2 + $0x28] sm:$0xff]
      %v232 = vld [vmem:[%s2 + $0x30] sm:$0xff]
      %v233 = vld [vmem:[%s2 + $0x38] sm:$0xff]
      %v234 = vld [vmem:[%s2 + $0x40] sm:$0xff]
      %v235 = vld [vmem:[%s2 + $0x48] sm:$0xff]
      %v236 = vld [vmem:[%s2 + $0x50] sm:$0xff]
      %v237 = vld [vmem:[%s2 + $0x58] sm:$0xff]
      %v238 = vld [vmem:[%s2 + $0x60] sm:$0xff]
      %v239 = vld [vmem:[%s2 + $0x68] sm:$0xff]
      %v240 = vld [vmem:[%s2 + $0x70] sm:$0xff]
      %v241 = vld [vmem:[%s2 + $0x78] sm:$0xff]
      %243 = vset.pattern.permute.xlu0 0
      %244 = vperm.xlu0 %243, %v226
      %v245 = vpop.permute.xlu0 %244
      %248 = vset.pattern.permute.xlu0 0
      %249 = vperm.xlu0 %248, %v227
      %v250 = vpop.permute.xlu0 %249
      %253 = vset.pattern.permute.xlu0 0
      %254 = vperm.xlu0 %253, %v228
      %v255 = vpop.permute.xlu0 %254
      %258 = vset.pattern.permute.xlu0 0
      %259 = vperm.xlu0 %258, %v229
      %v260 = vpop.permute.xlu0 %259
      %263 = vset.pattern.permute.xlu0 0
      %264 = vperm.xlu0 %263, %v230
      %v265 = vpop.permute.xlu0 %264
      %268 = vset.pattern.permute.xlu0 0
      %269 = vperm.xlu0 %268, %v231
      %v270 = vpop.permute.xlu0 %269
      %273 = vset.pattern.permute.xlu0 0
      %274 = vperm.xlu0 %273, %v232
      %v275 = vpop.permute.xlu0 %274
      %278 = vset.pattern.permute.xlu0 0
      %279 = vperm.xlu0 %278, %v233
      %v280 = vpop.permute.xlu0 %279
      %283 = vset.pattern.permute.xlu0 0
      %284 = vperm.xlu0 %283, %v234
      %v285 = vpop.permute.xlu0 %284
      %288 = vset.pattern.permute.xlu0 0
      %289 = vperm.xlu0 %288, %v235
      %v290 = vpop.permute.xlu0 %289
      %293 = vset.pattern.permute.xlu0 0
      %294 = vperm.xlu0 %293, %v236
      %v295 = vpop.permute.xlu0 %294
      %298 = vset.pattern.permute.xlu0 0
      %299 = vperm.xlu0 %298, %v237
      %v300 = vpop.permute.xlu0 %299
      %303 = vset.pattern.permute.xlu0 0
      %304 = vperm.xlu0 %303, %v238
      %v305 = vpop.permute.xlu0 %304
      %308 = vset.pattern.permute.xlu0 0
      %309 = vperm.xlu0 %308, %v239
      %v310 = vpop.permute.xlu0 %309
      %313 = vset.pattern.permute.xlu0 0
      %314 = vperm.xlu0 %313, %v240
      %v315 = vpop.permute.xlu0 %314
      %318 = vset.pattern.permute.xlu0 0
      %319 = vperm.xlu0 %318, %v241
      %v320 = vpop.permute.xlu0 %319
      %vm322 = vcmask 523264
      %v324 = vsel %vm322, %v202, 0
      %v327 = vsel %vm322, %v203, 0
      %v330 = vsel %vm322, %v204, 0
      %v333 = vsel %vm322, %v205, 0
      %v336 = vsel %vm322, %v206, 0
      %v339 = vsel %vm322, %v207, 0
      %v342 = vsel %vm322, %v208, 0
      %v345 = vsel %vm322, %v209, 0
      %v348 = vsel %vm322, %v210, 0
      %v351 = vsel %vm322, %v211, 0
      %v354 = vsel %vm322, %v212, 0
      %v357 = vsel %vm322, %v213, 0
      %v360 = vsel %vm322, %v214, 0
      %v363 = vsel %vm322, %v215, 0
      %v366 = vsel %vm322, %v216, 0
      %v369 = vsel %vm322, %v217, 0
      %371 = vmatprep.subr.mxu0 0.0
      %372 = vmatpush1.msra.mxu0 %v218
      %373 = vmatprep.subr.mxu0 0.0
      %374 = vmatpush1.msra.mxu0 %v219
      %375 = vmatprep.subr.mxu0 0.0
      %376 = vmatpush1.msra.mxu0 %v220
      %377 = vmatprep.subr.mxu0 0.0
      %378 = vmatpush1.msra.mxu0 %v221
      %379 = vmatprep.subr.mxu0 0.0
      %380 = vmatpush1.msra.mxu0 %v222
      %381 = vmatprep.subr.mxu0 0.0
      %382 = vmatpush1.msra.mxu0 %v223
      %383 = vmatprep.subr.mxu0 0.0
      %384 = vmatpush1.msra.mxu0 %v224
      %385 = vmatprep.subr.mxu0 0.0
      %386 = vmatpush1.msra.mxu0 %v225
      %387 = vmatprep.subr.mxu0 0.0
      %388 = vmatpush1.msra.mxu0 0.0
      %389 = vmatprep.subr.mxu0 0.0
      %390 = vmatpush1.msra.mxu0 0.0
      %391 = vmatprep.subr.mxu0 0.0
      %392 = vmatpush1.msra.mxu0 0.0
      %393 = vmatprep.subr.mxu0 0.0
      %394 = vmatpush1.msra.mxu0 0.0
      %395 = vmatprep.subr.mxu0 0.0
      %396 = vmatpush1.msra.mxu0 0.0
      %397 = vmatprep.subr.mxu0 0.0
      %398 = vmatpush1.msra.mxu0 0.0
      %399 = vmatprep.subr.mxu0 0.0
      %400 = vmatpush1.msra.mxu0 0.0
      %401 = vmatprep.subr.mxu0 0.0
      %402 = vmatpush1.msra.mxu0 0.0
      %403 = vmatprep.subr.mxu0 0.0
      %404 = vmatpush1.msra.mxu0 0.0
      %405 = vmatprep.subr.mxu0 0.0
      %406 = vmatpush1.msra.mxu0 0.0
      %407 = vmatprep.subr.mxu0 0.0
      %408 = vmatpush1.msra.mxu0 0.0
      %409 = vmatprep.subr.mxu0 0.0
      %410 = vmatpush1.msra.mxu0 0.0
      %411 = vmatprep.subr.mxu0 0.0
      %412 = vmatpush1.msra.mxu0 0.0
      %413 = vmatprep.subr.mxu0 0.0
      %414 = vmatpush1.msra.mxu0 0.0
      %415 = vmatprep.subr.mxu0 0.0
      %416 = vmatpush1.msra.mxu0 0.0
      %417 = vmatprep.subr.mxu0 0.0
      %418 = vmatpush1.msra.mxu0 0.0
      %419 = vmatprep.subr.mxu0 0.0
      %420 = vmatpush1.msra.mxu0 0.0
      %421 = vmatprep.subr.mxu0 0.0
      %422 = vmatpush1.msra.mxu0 0.0
      %423 = vmatprep.subr.mxu0 0.0
      %424 = vmatpush1.msra.mxu0 0.0
      %425 = vmatprep.subr.mxu0 0.0
      %426 = vmatpush1.msra.mxu0 0.0
      %427 = vmatprep.subr.mxu0 0.0
      %428 = vmatpush1.msra.mxu0 0.0
      %429 = vmatprep.subr.mxu0 0.0
      %430 = vmatpush1.msra.mxu0 0.0
      %431 = vmatprep.subr.mxu0 0.0
      %432 = vmatpush1.msra.mxu0 0.0
      %433 = vmatprep.subr.mxu0 0.0
      %434 = vmatpush1.msra.mxu0 0.0
      %435 = vmatprep.mubr.f32.mxu0 0.0
      %436 = vmatmul.mubr.f32.gmra.mrb[0].mxu0 %v324
      %v437 = vpop.f32.mrb[0].mxu0
      %v438 = vadd.f32 %v245, %v437
      %v439 = vpop.f32.mrb[0].mxu0
      %440 = vmatprep.mubr.f32.mxu0 0.0
      %441 = vmatmul.mubr.f32.gmra.mrb[0].mxu0 %v327
      %v442 = vpop.f32.mrb[0].mxu0
      %v443 = vadd.f32 %v250, %v442
      %v444 = vpop.f32.mrb[0].mxu0
      %445 = vmatprep.mubr.f32.mxu0 0.0
      %446 = vmatmul.mubr.f32.gmra.mrb[0].mxu0 %v330
      %v447 = vpop.f32.mrb[0].mxu0
      %v448 = vadd.f32 %v255, %v447
      %v449 = vpop.f32.mrb[0].mxu0
      %450 = vmatprep.mubr.f32.mxu0 0.0
      %451 = vmatmul.mubr.f32.gmra.mrb[0].mxu0 %v333
      %v452 = vpop.f32.mrb[0].mxu0
      %v453 = vadd.f32 %v260, %v452
      %v454 = vpop.f32.mrb[0].mxu0
      %455 = vmatprep.mubr.f32.mxu0 0.0
      %456 = vmatmul.mubr.f32.gmra.mrb[0].mxu0 %v336
      %v457 = vpop.f32.mrb[0].mxu0
      %v458 = vadd.f32 %v265, %v457
      %v459 = vpop.f32.mrb[0].mxu0
      %460 = vmatprep.mubr.f32.mxu0 0.0
      %461 = vmatmul.mubr.f32.gmra.mrb[0].mxu0 %v339
      %v462 = vpop.f32.mrb[0].mxu0
      %v463 = vadd.f32 %v270, %v462
      %v464 = vpop.f32.mrb[0].mxu0
      %465 = vmatprep.mubr.f32.mxu0 0.0
      %466 = vmatmul.mubr.f32.gmra.mrb[0].mxu0 %v342
      %v467 = vpop.f32.mrb[0].mxu0
      %v468 = vadd.f32 %v275, %v467
      %v469 = vpop.f32.mrb[0].mxu0
      %470 = vmatprep.mubr.f32.mxu0 0.0
      %471 = vmatmul.mubr.f32.gmra.mrb[0].mxu0 %v345
      %v472 = vpop.f32.mrb[0].mxu0
      %v473 = vadd.f32 %v280, %v472
      %v474 = vpop.f32.mrb[0].mxu0
      %475 = vmatprep.mubr.f32.mxu0 0.0
      %476 = vmatmul.mubr.f32.gmra.mrb[0].mxu0 %v348
      %v477 = vpop.f32.mrb[0].mxu0
      %v478 = vadd.f32 %v285, %v477
      %v479 = vpop.f32.mrb[0].mxu0
      %480 = vmatprep.mubr.f32.mxu0 0.0
      %481 = vmatmul.mubr.f32.gmra.mrb[0].mxu0 %v351
      %v482 = vpop.f32.mrb[0].mxu0
      %v483 = vadd.f32 %v290, %v482
      %v484 = vpop.f32.mrb[0].mxu0
      %485 = vmatprep.mubr.f32.mxu0 0.0
      %486 = vmatmul.mubr.f32.gmra.mrb[0].mxu0 %v354
      %v487 = vpop.f32.mrb[0].mxu0
      %v488 = vadd.f32 %v295, %v487
      %v489 = vpop.f32.mrb[0].mxu0
      %490 = vmatprep.mubr.f32.mxu0 0.0
      %491 = vmatmul.mubr.f32.gmra.mrb[0].mxu0 %v357
      %v492 = vpop.f32.mrb[0].mxu0
      %v493 = vadd.f32 %v300, %v492
      %v494 = vpop.f32.mrb[0].mxu0
      %495 = vmatprep.mubr.f32.mxu0 0.0
      %496 = vmatmul.mubr.f32.gmra.mrb[0].mxu0 %v360
      %v497 = vpop.f32.mrb[0].mxu0
      %v498 = vadd.f32 %v305, %v497
      %v499 = vpop.f32.mrb[0].mxu0
      %500 = vmatprep.mubr.f32.mxu0 0.0
      %501 = vmatmul.mubr.f32.gmra.mrb[0].mxu0 %v363
      %v502 = vpop.f32.mrb[0].mxu0
      %v503 = vadd.f32 %v310, %v502
      %v504 = vpop.f32.mrb[0].mxu0
      %505 = vmatprep.mubr.f32.mxu0 0.0
      %506 = vmatmul.mubr.f32.gmra.mrb[0].mxu0 %v366
      %v507 = vpop.f32.mrb[0].mxu0
      %v508 = vadd.f32 %v315, %v507
      %v509 = vpop.f32.mrb[0].mxu0
      %510 = vmatprep.mubr.f32.mxu0 0.0
      %511 = vmatmul.mubr.f32.gmra.mrb[0].mxu0 %v369
      %v512 = vpop.f32.mrb[0].mxu0
      %v513 = vadd.f32 %v320, %v512
      %v514 = vpop.f32.mrb[0].mxu0
      %515 = vdwg.mxu0
      %vm516 = vcmask 130048
      %517 = vst.msk [vmem:[%s201] sm:$0xff] %vm516, %v438
      %518 = vst.msk [vmem:[%s201 + $0x8] sm:$0xff] %vm516, %v443
      %519 = vst.msk [vmem:[%s201 + $0x10] sm:$0xff] %vm516, %v448
      %520 = vst.msk [vmem:[%s201 + $0x18] sm:$0xff] %vm516, %v453
      %521 = vst.msk [vmem:[%s201 + $0x20] sm:$0xff] %vm516, %v458
      %522 = vst.msk [vmem:[%s201 + $0x28] sm:$0xff] %vm516, %v463
      %523 = vst.msk [vmem:[%s201 + $0x30] sm:$0xff] %vm516, %v468
      %524 = vst.msk [vmem:[%s201 + $0x38] sm:$0xff] %vm516, %v473
      %525 = vst.msk [vmem:[%s201 + $0x40] sm:$0xff] %vm516, %v478
      %526 = vst.msk [vmem:[%s201 + $0x48] sm:$0xff] %vm516, %v483
      %527 = vst.msk [vmem:[%s201 + $0x50] sm:$0xff] %vm516, %v488
      %528 = vst.msk [vmem:[%s201 + $0x58] sm:$0xff] %vm516, %v493
      %529 = vst.msk [vmem:[%s201 + $0x60] sm:$0xff] %vm516, %v498
      %530 = vst.msk [vmem:[%s201 + $0x68] sm:$0xff] %vm516, %v503
      %531 = vst.msk [vmem:[%s201 + $0x70] sm:$0xff] %vm516, %v508
      %532 = vst.msk [vmem:[%s201 + $0x78] sm:$0xff] %vm516, %v513
      %p533 = scmp.lt.s32.totalorder %s18, 1
      %s534 = scalar_select %p533, %s18, 1
      %p535 = scmp.lt.s32.totalorder %s19, 0
      %s536 = scalar_select %p535, %s19, 0
      %s537 = smul.addr %s534, 16
      %s538 = sadd.s32 %s536, %s537
      %s539 = smul.addr %s538, 8
      %s540 = scalar_lea.vmem %s3, %s539
      // Predicated region
      $region33: #{tpu_custom_call.1} parent=31 // pred_check
        %p541 = pneg %p116
      $region34: #{tpu_custom_call.1} parent=31 // pred_check_branch
        %543 = sbr.rel (%p541) target = $region36
      $region35: #{tpu_custom_call.1} parent=31 // pred_region
        _
      $region36: #{tpu_custom_call.1} parent=31 // pred_fallthru
        _
    $region32: #{tpu_custom_call.1} parent=5 // pred_fallthru
      _
    %p544 = scmp.le.s32.totalorder 2, %s9
    // Predicated region
    $region37: #{tpu_custom_call.1} parent=5 // pred_check
      %p545 = pneg %p544
    $region38: #{tpu_custom_call.1} parent=5 // pred_check_branch
      %547 = sbr.rel (%p545) target = $region40
    $region39: #{tpu_custom_call.1} parent=5 // pred_region
      %s548 = ssub.s32 %s9, 2
      // Predicated region
      $region41: #{tpu_custom_call.1} parent=39 // pred_check
        %p549 = pneg %p122
      $region42: #{tpu_custom_call.1} parent=39 // pred_check_branch
        %551 = sbr.rel (%p549) target = $region44
      $region43: #{tpu_custom_call.1} parent=39 // pred_region
        %p552 = scmp.lt.s32.totalorder %s20, 1
        %s553 = scalar_select %p552, %s20, 1
        %p554 = scmp.lt.s32.totalorder %s21, 0
        %s555 = scalar_select %p554, %s21, 0
        %s556 = smul.addr %s553, 16
        %s557 = sadd.s32 %s555, %s556
        %s558 = smul.addr %s557, 8
        %s559 = scalar_lea.vmem %s3, %s558
      $region44: #{tpu_custom_call.1} parent=39 // pred_fallthru
        _
    $region40: #{tpu_custom_call.1} parent=5 // pred_fallthru
      _
  $region6: #{tpu_custom_call.1} parent=0 // loop_footer
    %s13 = sadd.s32 1, %s9
  $region7: #{tpu_custom_call.1} parent=0 // loop_footer_branch
    %8 = sbr.rel target = $region3
  $region8: #{tpu_custom_call.1} parent=0 // loop_exit
    _

</llo_original>
